<compile_context>
chip_gen: v7x
topology: tpu7x:2x2x1
jax: 0.10.0
libtpu: 0.0.40
codegen_flags: <defaults>
</compile_context>

<pallas_src>
import functools

import jax
import jax.numpy as jnp
from jax import lax
from jax.experimental import pallas as pl
from jax.experimental.pallas import tpu as pltpu


def kge_kernel(hr_ref, e_ref, out_ref):
    # hr_ref: (B, D) resident ; e_ref: (TN, D) entity-table tile ; out_ref: (B, TN)
    # Contract over D directly (rhs contraction dim = 1) -> MXU, no transpose.
    score = lax.dot_general(
        hr_ref[...], e_ref[...],
        dimension_numbers=(((1,), (1,)), ((), ())),
        preferred_element_type=jnp.float32,
    )
    out_ref[...] = jax.nn.sigmoid(score).astype(out_ref.dtype)


@functools.partial(jax.jit, static_argnames=("tn", "e_stream_dtype"))
def kge_forward(E_weight, R_weight, head_list, rel_list, *, tn=512,
                e_stream_dtype=None):
    """Pallas implementation of KGE.forward.

    E_weight: (N_ent, D) float32
    R_weight: (N_rel, D) float32
    head_list, rel_list: (B,) int32
    tn: entity tile width (sweep 512-2048 per chip; 256-aligned for v7x MXU)
    e_stream_dtype: optional narrower dtype (e.g. jnp.bfloat16) to stream E/hr;
                    accumulation stays in f32.
    returns: (B, N_ent) float32 sigmoid scores
    """
    n_ent, d = E_weight.shape
    b = head_list.shape[0]

    # Embedding gathers + elementwise product (cheap glue, plain JAX).
    h = E_weight[head_list]          # (B, D)
    r = R_weight[rel_list]           # (B, D)
    hr = h * r                       # (B, D) -- done once, resident in VMEM

    # Pad entity axis up to a multiple of tn so every tile is full & lane-dense.
    n_tiles = pl.cdiv(n_ent, tn)
    n_pad = n_tiles * tn
    e_in = E_weight
    if n_pad != n_ent:
        e_in = jnp.pad(E_weight, ((0, n_pad - n_ent), (0, 0)))

    # Optional narrow streaming dtype for the dominant HBM stream.
    if e_stream_dtype is not None:
        e_in = e_in.astype(e_stream_dtype)
        hr = hr.astype(e_stream_dtype)

    e_itemsize = jnp.dtype(e_in.dtype).itemsize
    hr_itemsize = jnp.dtype(hr.dtype).itemsize

    cost = pl.CostEstimate(
        flops=2 * b * d * n_pad,
        transcendentals=b * n_pad,                       # sigmoid
        bytes_accessed=(n_pad * d * e_itemsize           # stream E
                        + b * n_pad * 4                  # write output
                        + b * d * hr_itemsize),          # read hr once
    )

    # VMEM budget: double-buffered E tile + double-buffered output tile + hr.
    vmem_need = 2 * tn * d * e_itemsize + 2 * b * tn * 4 + b * d * hr_itemsize
    cp_kwargs = dict(dimension_semantics=("parallel",))
    if vmem_need > (24 << 20):
        # Only raise the scoped-VMEM limit when large tiles actually need it
        # (keeps headroom on v7x's 64 MiB VMEM, helps v5e's 16 MiB default).
        cp_kwargs["vmem_limit_bytes"] = int(min(vmem_need * 3 // 2 + (2 << 20),
                                                100 << 20))

    out = pl.pallas_call(
        kge_kernel,
        out_shape=jax.ShapeDtypeStruct((b, n_pad), jnp.float32),
        grid_spec=pltpu.PrefetchScalarGridSpec(
            num_scalar_prefetch=0,
            grid=(n_tiles,),
            in_specs=[
                pl.BlockSpec((b, d), lambda j: (0, 0)),    # hr (resident)
                pl.BlockSpec((tn, d), lambda j: (j, 0)),   # entity-table tile
            ],
            out_specs=pl.BlockSpec((b, tn), lambda j: (0, j)),
        ),
        compiler_params=pltpu.CompilerParams(**cp_kwargs),
        cost_estimate=cost,
    )(hr, e_in)

    if n_pad != n_ent:
        out = out[:, :n_ent]
    return out


def kge_reference(E_weight, R_weight, head_list, rel_list):
    h = E_weight[head_list]
    r = R_weight[rel_list]
    return jax.nn.sigmoid((h * r) @ E_weight.T)


if __name__ == "__main__":
    # Small, deterministic setup consistent with the module's __init__.
    N_ENT, N_REL, D, B = 1024, 16, 64, 8

    key = jax.random.PRNGKey(0)
    k_e, k_r, k_h, k_rel = jax.random.split(key, 4)
    E_weight = jax.random.normal(k_e, (N_ENT, D), dtype=jnp.float32)
    R_weight = jax.random.normal(k_r, (N_REL, D), dtype=jnp.float32)
    head_list = jax.random.randint(k_h, (B,), 0, N_ENT, dtype=jnp.int32)
    rel_list = jax.random.randint(k_rel, (B,), 0, N_REL, dtype=jnp.int32)

    # 1) Divisible entity count, f32 streaming.
    out = kge_forward(E_weight, R_weight, head_list, rel_list, tn=512)
    out = jax.block_until_ready(out)
    ref = kge_reference(E_weight, R_weight, head_list, rel_list)
    assert out.shape == (B, N_ENT)
    assert jnp.allclose(out, ref, atol=1e-5, rtol=1e-5), "mismatch vs reference (f32)"

    # 2) Non-divisible entity count -> exercises the padded last tile path.
    N_ENT2 = 900
    E2 = E_weight[:N_ENT2]
    head2 = head_list % N_ENT2
    out2 = kge_forward(E2, R_weight, head2, rel_list, tn=512)
    out2 = jax.block_until_ready(out2)
    ref2 = kge_reference(E2, R_weight, head2, rel_list)
    assert out2.shape == (B, N_ENT2)
    assert jnp.allclose(out2, ref2, atol=1e-5, rtol=1e-5), "mismatch vs reference (padded)"

    # 3) bf16 streaming of the entity table (memory-bound fast path).
    out3 = kge_forward(E_weight, R_weight, head_list, rel_list, tn=512,
                       e_stream_dtype=jnp.bfloat16)
    out3 = jax.block_until_ready(out3)
    assert out3.shape == (B, N_ENT)
    assert jnp.allclose(out3, ref, atol=5e-2), "mismatch vs reference (bf16 stream)"

    print("KERNEL_OK")
</pallas_src>

<mosaic_0001>
module attributes {stable_mosaic.version = 11 : i64} {
  func.func @kge_kernel(%arg0: i32, %arg1: memref<8x64xf32, #tpu.memory_space<vmem>>, %arg2: memref<512x64xf32, #tpu.memory_space<vmem>>, %arg3: memref<8x512xf32, #tpu.memory_space<vmem>>) attributes {dimension_semantics = [#tpu.dimension_semantics<parallel>], iteration_bounds = array<i64: 2>, scalar_prefetch = 0 : i64, scratch_operands = 0 : i64, tpu.core_type = #tpu.core_type<tc>, window_params = [{pipeline_mode = #tpu.pipeline_mode<synchronous>, transform_indices = @transform_0, window_bounds = array<i64: 8, 64>}, {transform_indices = @transform_1, window_bounds = array<i64: 512, 64>}, {transform_indices = @transform_2, window_bounds = array<i64: 8, 512>}]} {
    %c0 = arith.constant 0 : index
    %c0_0 = arith.constant 0 : index
    %0 = vector.load %arg1[%c0, %c0_0] : memref<8x64xf32, #tpu.memory_space<vmem>>, vector<8x64xf32>
    %c0_1 = arith.constant 0 : index
    %c0_2 = arith.constant 0 : index
    %1 = vector.load %arg2[%c0_1, %c0_2] : memref<512x64xf32, #tpu.memory_space<vmem>>, vector<512x64xf32>
    %cst = arith.constant dense<0.000000e+00> : vector<8x512xf32>
    %2 = tpu.matmul %0, %1, %cst {dimension_numbers = #tpu.dot_dimension_numbers<[1], [1], [0], [0], [0, 0, 1, 0], [], []>} : vector<8x64xf32>, vector<512x64xf32>, vector<8x512xf32> -> vector<8x512xf32>
    %3 = arith.negf %2 : vector<8x512xf32>
    %4 = math.exp %3 : vector<8x512xf32>
    %cst_3 = arith.constant 1.000000e+00 : f32
    %5 = vector.broadcast %cst_3 : f32 to vector<8x512xf32>
    %6 = arith.addf %5, %4 : vector<8x512xf32>
    %7 = arith.divf %5, %6 : vector<8x512xf32>
    %c0_4 = arith.constant 0 : index
    %c0_5 = arith.constant 0 : index
    %8 = vector.load %arg3[%c0_4, %c0_5] : memref<8x512xf32, #tpu.memory_space<vmem>>, vector<8x512xf32>
    tpu.vector_store %arg3[%c0_4, %c0_5], %7 {strides = array<i32>} : memref<8x512xf32, #tpu.memory_space<vmem>>, vector<8x512xf32>,
    return
  }
  func.func @transform_0(%arg0: i32) -> (i32, i32) {
    %c0_i32 = arith.constant 0 : i32
    %c0_i32_0 = arith.constant 0 : i32
    %c0_i32_1 = arith.constant 0 : i32
    return %c0_i32, %c0_i32_0 : i32, i32
  }
  func.func @transform_1(%arg0: i32) -> (i32, i32) {
    %c0_i32 = arith.constant 0 : i32
    %c0_i32_0 = arith.constant 0 : i32
    return %arg0, %c0_i32 : i32, i32
  }
  func.func @transform_2(%arg0: i32) -> (i32, i32) {
    %c0_i32 = arith.constant 0 : i32
    %c0_i32_0 = arith.constant 0 : i32
    return %c0_i32, %arg0 : i32, i32
  }
}

</mosaic_0001>

<llo_original>
// kernel: mul.1
$region0: #{mul.1}
  #allocation0 [shape = 's32[1]{0}', space=sflag, size = 0x4, scoped, tag = 'scoped memory for mul.1']
  %s0 = inlined_call_operand.vmem [shape: f32[8,64], index: 0, kind: input, shape index: {}]
  %s1 = inlined_call_operand.vmem [shape: f32[8,64], index: 1, kind: input, shape index: {}]
  %s2 = inlined_call_operand.vmem [shape: f32[8,64], index: 2, kind: output, shape index: {}]
  %v3 = vld [vmem:[%s0] sm:$0xff]
  %v4 = vld [vmem:[%s1] sm:$0xff]
  %5 = xla_tuple %v3, %v4
  %6 = xla_tuple %5
  %v7 = vmul.f32 %v3, %v4
  %8 = xla_tuple %v7
  %9 = vst [vmem:[%s2] sm:$0xff] %v7

// kernel: kge_forward.1
$region0: #{kge_forward.1}
  #allocation0 [shape = 'u32[]', space=smem, size = 0x4, offset = 0x4, fixed_abs, tag = 'smem constant byte address 0x4 - core index']
  #allocation1 [shape = 'u32[144,128]{1,0:T(1,128)}', space=vmem, size = 0x12000, scoped, tag = 'internal scratch']
  %s0 = inlined_call_operand.vmem [shape: f32[8,64], index: 0, kind: input, shape index: {}]
  %s1 = inlined_call_operand.vmem [shape: f32[1024,64], index: 1, kind: input, shape index: {}]
  %s2 = inlined_call_operand.hbm [shape: f32[8,1024], index: 2, kind: output, shape index: {}]
  %s3 = sld [smem:[#allocation0]]
  $region41: #{kge_forward.1} parent=0
    _
  %s5 = ssub.s32 1, %s3
  %s6 = scalar_select 0, %s5, %s3
  $region1: #{kge_forward.1} parent=0
    #allocation2 [shape = 'u8[32768]{0}', space=vmem, size = 0x8000, scoped, tag = 'output window, operand 0']
    #allocation3 [shape = 's32[2]{0}', space=sflag, size = 0x8, scoped, tag = 'scoped memory for kge_forward.1']
    %7 = vsyncpa [#allocation3], 0
    %s8 = scalar_lea.sflag [#allocation3], 1
    %9 = vsyncpa %s8, 0
    loop: start=0, step=1, limit=4
    $region2: #{kge_forward.1} parent=1 // loop_pre_header
      _
    $region3: #{kge_forward.1} parent=1 // loop_header
      %s11 = sphi 0, %s15
      %p12 = scmp.ge.s32.totalorder %s11, 4
      %s19 = sphi 0, %s19
      %s21 = sphi 0, %s19
      %s22 = sphi 0, %s21
      %s36 = sphi 0, %s22
      %s42 = sphi 0, %s44
      %s45 = sphi 0, %s42
      %s46 = sphi 0, %s45
      %s62 = sphi 0, %s46
      %s68 = sphi 0, %s70
      %s71 = sphi 0, %s68
      %s72 = sphi 0, %s71
      %s88 = sphi 0, %s72
    $region4: #{kge_forward.1} parent=1 // loop_header_branch
      %14 = sbr.rel (%p12) target = $region8
    $region5: #{kge_forward.1} parent=1 // loop_body
      %s16 = ssub.s32 %s11, 1
      %s17 = ssub.s32 %s11, 2
      %s18 = sadd.s32 %s11, 1
      %s20 = sadd.s32 %s19, 1
      %p23 = scmp.eq.s32.totalorder %s11, 1
      %p24 = scmp.ne.s32.totalorder %s19, %s21
      %p25 = scmp.eq.s32.totalorder %s11, 0
      %p26 = por %p24, %p25
      %p27 = scmp.ne.s32.totalorder %s19, %s21
      %p28 = scmp.eq.s32.totalorder %s16, 1
      %p29 = por %p27, %p28
      %p30 = scmp.ne.s32.totalorder %s21, %s22
      %p31 = scmp.eq.s32.totalorder %s16, 0
      %p32 = por %p30, %p31
      %p33 = scmp.ne.s32.totalorder %s21, %s22
      %p34 = scmp.eq.s32.totalorder %s17, 1
      %p35 = por %p33, %p34
      %p37 = scmp.ne.s32.totalorder %s22, %s36
      %p38 = scmp.eq.s32.totalorder %s17, 0
      %p39 = por %p37, %p38
      %s40 = ssub.s32 %s11, %s18
      %p41 = scmp.eq.s32.totalorder %s40, 0
      %s43 = sadd.s32 %s42, 1
      %s44 = scalar_select %p41, %s42, %s43
      %p47 = pneg %p41
      %p48 = scmp.eq.s32.totalorder %s11, 1
      %p49 = por %p47, %p48
      %p50 = scmp.ne.s32.totalorder %s42, %s45
      %p51 = scmp.eq.s32.totalorder %s11, 0
      %p52 = por %p50, %p51
      %p53 = scmp.ne.s32.totalorder %s42, %s45
      %p54 = scmp.eq.s32.totalorder %s16, 1
      %p55 = por %p53, %p54
      %p56 = scmp.ne.s32.totalorder %s45, %s46
      %p57 = scmp.eq.s32.totalorder %s16, 0
      %p58 = por %p56, %p57
      %p59 = scmp.ne.s32.totalorder %s45, %s46
      %p60 = scmp.eq.s32.totalorder %s17, 1
      %p61 = por %p59, %p60
      %p63 = scmp.ne.s32.totalorder %s46, %s62
      %p64 = scmp.eq.s32.totalorder %s17, 0
      %p65 = por %p63, %p64
      %s66 = ssub.s32 %s11, %s18
      %p67 = scmp.eq.s32.totalorder %s66, 0
      %s69 = sadd.s32 %s68, 1
      %s70 = scalar_select %p67, %s68, %s69
      %p73 = pneg %p67
      %p74 = scmp.eq.s32.totalorder %s11, 1
      %p75 = por %p73, %p74
      %p76 = scmp.ne.s32.totalorder %s68, %s71
      %p77 = scmp.eq.s32.totalorder %s11, 0
      %p78 = por %p76, %p77
      %p79 = scmp.ne.s32.totalorder %s68, %s71
      %p80 = scmp.eq.s32.totalorder %s16, 1
      %p81 = por %p79, %p80
      %p82 = scmp.ne.s32.totalorder %s71, %s72
      %p83 = scmp.eq.s32.totalorder %s16, 0
      %p84 = por %p82, %p83
      %p85 = scmp.ne.s32.totalorder %s71, %s72
      %p86 = scmp.eq.s32.totalorder %s17, 1
      %p87 = por %p85, %p86
      %p89 = scmp.ne.s32.totalorder %s72, %s88
      %p90 = scmp.eq.s32.totalorder %s17, 0
      %p91 = por %p89, %p90
      %p92 = scmp.le.s32.totalorder 1, %s11
      %p93 = scmp.lt.s32.totalorder %s11, 3
      %p94 = pnand %p92, %p93
      %p95 = pneg %p94
      // Predicated region
      $region9: #{kge_forward.1} parent=5 // pred_check
        _
      $region10: #{kge_forward.1} parent=5 // pred_check_branch
        %97 = sbr.rel (%p94) target = $region12
      $region11: #{kge_forward.1} parent=5 // pred_region
        %s98 = ssub.s32 %s11, 1
        // Predicated region
        $region13: #{kge_forward.1} parent=11 // pred_check
          %p99 = pneg %p32
        $region14: #{kge_forward.1} parent=11 // pred_check_branch
          %101 = sbr.rel (%p99) target = $region16
        $region15: #{kge_forward.1} parent=11 // pred_region
          _
        $region16: #{kge_forward.1} parent=11 // pred_fallthru
          _
      $region12: #{kge_forward.1} parent=5 // pred_fallthru
        _
      %p102 = scmp.lt.s32.totalorder %s11, 2
      // Predicated region
      $region17: #{kge_forward.1} parent=5 // pred_check
        %p103 = pneg %p102
      $region18: #{kge_forward.1} parent=5 // pred_check_branch
        %105 = sbr.rel (%p103) target = $region20
      $region19: #{kge_forward.1} parent=5 // pred_region
        // Predicated region
        $region21: #{kge_forward.1} parent=19 // pred_check
          %p106 = pneg %p52
        $region22: #{kge_forward.1} parent=19 // pred_check_branch
          %108 = sbr.rel (%p106) target = $region24
        $region23: #{kge_forward.1} parent=19 // pred_region
          %s109 = smul.u32 64, %s11
          %p110 = scmp.lt.s32.totalorder %s109, 127
          %s111 = scalar_select %p110, %s109, 127
          %s112 = smul.addr %s111, 8
          %s113 = scalar_lea.vmem %s1, %s112
          %s114 = smul.u32 64, %s11
        $region24: #{kge_forward.1} parent=19 // pred_fallthru
          _
      $region20: #{kge_forward.1} parent=5 // pred_fallthru
        _
      %p115 = scmp.le.s32.totalorder 1, %s11
      %p116 = scmp.lt.s32.totalorder %s11, 3
      %p117 = pnand %p115, %p116
      %p118 = pneg %p117
      // Predicated region
      $region25: #{kge_forward.1} parent=5 // pred_check
        _
      $region26: #{kge_forward.1} parent=5 // pred_check_branch
        %120 = sbr.rel (%p117) target = $region28
      $region27: #{kge_forward.1} parent=5 // pred_region
        %s121 = ssub.s32 %s11, 1
        %p122 = pneg %p32
        %p123 = pneg %p29
        %s124 = smul.u32 64, %s16
        %p125 = scmp.lt.s32.totalorder %s124, 127
        %s126 = scalar_select %p125, %s124, 127
        %s127 = smul.addr %s126, 8
        %s128 = scalar_lea.vmem %s1, %s127
        %p129 = pneg %p58
        %p130 = pneg %p55
        %p131 = pneg %p84
        %p132 = pneg %p81
        %s133 = sand.u32 %s71, 1
        %s134 = scalar_lea.sflag [#allocation3], %s133
        %s135 = sand.u32 %s71, 1
        %s136 = smul.addr %s135, 32
        %s137 = scalar_lea.vmem [#allocation2], %s136
        %s138 = smul.u32 64, %s16
        %p139 = scmp.lt.s32.totalorder %s138, 127
        %s140 = scalar_select %p139, %s138, 127
        %s141 = smul.addr %s140, 8
        %s142 = scalar_lea.vmem %s1, %s141
        %s143 = smul.u32 64, %s16
        %s144 = smul.u32 4, %s16
        %v145 = vld [vmem:[%s0] sm:$0xff]
        %v146 = vld [vmem:[%s142] sm:$0xff]
        %v147 = vld [vmem:[%s142 + $0x8] sm:$0xff]
        %v148 = vld [vmem:[%s142 + $0x10] sm:$0xff]
        %v149 = vld [vmem:[%s142 + $0x18] sm:$0xff]
        %v150 = vld [vmem:[%s142 + $0x20] sm:$0xff]
        %v151 = vld [vmem:[%s142 + $0x28] sm:$0xff]
        %v152 = vld [vmem:[%s142 + $0x30] sm:$0xff]
        %v153 = vld [vmem:[%s142 + $0x38] sm:$0xff]
        %v154 = vld [vmem:[%s142 + $0x40] sm:$0xff]
        %v155 = vld [vmem:[%s142 + $0x48] sm:$0xff]
        %v156 = vld [vmem:[%s142 + $0x50] sm:$0xff]
        %v157 = vld [vmem:[%s142 + $0x58] sm:$0xff]
        %v158 = vld [vmem:[%s142 + $0x60] sm:$0xff]
        %v159 = vld [vmem:[%s142 + $0x68] sm:$0xff]
        %v160 = vld [vmem:[%s142 + $0x70] sm:$0xff]
        %v161 = vld [vmem:[%s142 + $0x78] sm:$0xff]
        %v162 = vld [vmem:[%s142 + $0x80] sm:$0xff]
        %v163 = vld [vmem:[%s142 + $0x88] sm:$0xff]
        %v164 = vld [vmem:[%s142 + $0x90] sm:$0xff]
        %v165 = vld [vmem:[%s142 + $0x98] sm:$0xff]
        %v166 = vld [vmem:[%s142 + $0xa0] sm:$0xff]
        %v167 = vld [vmem:[%s142 + $0xa8] sm:$0xff]
        %v168 = vld [vmem:[%s142 + $0xb0] sm:$0xff]
        %v169 = vld [vmem:[%s142 + $0xb8] sm:$0xff]
        %v170 = vld [vmem:[%s142 + $0xc0] sm:$0xff]
        %v171 = vld [vmem:[%s142 + $0xc8] sm:$0xff]
        %v172 = vld [vmem:[%s142 + $0xd0] sm:$0xff]
        %v173 = vld [vmem:[%s142 + $0xd8] sm:$0xff]
        %v174 = vld [vmem:[%s142 + $0xe0] sm:$0xff]
        %v175 = vld [vmem:[%s142 + $0xe8] sm:$0xff]
        %v176 = vld [vmem:[%s142 + $0xf0] sm:$0xff]
        %v177 = vld [vmem:[%s142 + $0xf8] sm:$0xff]
        %v178 = vld [vmem:[%s142 + $0x100] sm:$0xff]
        %v179 = vld [vmem:[%s142 + $0x108] sm:$0xff]
        %v180 = vld [vmem:[%s142 + $0x110] sm:$0xff]
        %v181 = vld [vmem:[%s142 + $0x118] sm:$0xff]
        %v182 = vld [vmem:[%s142 + $0x120] sm:$0xff]
        %v183 = vld [vmem:[%s142 + $0x128] sm:$0xff]
        %v184 = vld [vmem:[%s142 + $0x130] sm:$0xff]
        %v185 = vld [vmem:[%s142 + $0x138] sm:$0xff]
        %v186 = vld [vmem:[%s142 + $0x140] sm:$0xff]
        %v187 = vld [vmem:[%s142 + $0x148] sm:$0xff]
        %v188 = vld [vmem:[%s142 + $0x150] sm:$0xff]
        %v189 = vld [vmem:[%s142 + $0x158] sm:$0xff]
        %v190 = vld [vmem:[%s142 + $0x160] sm:$0xff]
        %v191 = vld [vmem:[%s142 + $0x168] sm:$0xff]
        %v192 = vld [vmem:[%s142 + $0x170] sm:$0xff]
        %v193 = vld [vmem:[%s142 + $0x178] sm:$0xff]
        %v194 = vld [vmem:[%s142 + $0x180] sm:$0xff]
        %v195 = vld [vmem:[%s142 + $0x188] sm:$0xff]
        %v196 = vld [vmem:[%s142 + $0x190] sm:$0xff]
        %v197 = vld [vmem:[%s142 + $0x198] sm:$0xff]
        %v198 = vld [vmem:[%s142 + $0x1a0] sm:$0xff]
        %v199 = vld [vmem:[%s142 + $0x1a8] sm:$0xff]
        %v200 = vld [vmem:[%s142 + $0x1b0] sm:$0xff]
        %v201 = vld [vmem:[%s142 + $0x1b8] sm:$0xff]
        %v202 = vld [vmem:[%s142 + $0x1c0] sm:$0xff]
        %v203 = vld [vmem:[%s142 + $0x1c8] sm:$0xff]
        %v204 = vld [vmem:[%s142 + $0x1d0] sm:$0xff]
        %v205 = vld [vmem:[%s142 + $0x1d8] sm:$0xff]
        %v206 = vld [vmem:[%s142 + $0x1e0] sm:$0xff]
        %v207 = vld [vmem:[%s142 + $0x1e8] sm:$0xff]
        %v208 = vld [vmem:[%s142 + $0x1f0] sm:$0xff]
        %v209 = vld [vmem:[%s142 + $0x1f8] sm:$0xff]
        %vm210 = vcmask 523264
        %v212 = vsel %vm210, %v145, 0
        %v215 = vsel %vm210, %v146, 0
        %v218 = vsel %vm210, %v147, 0
        %v221 = vsel %vm210, %v148, 0
        %v224 = vsel %vm210, %v149, 0
        %v227 = vsel %vm210, %v150, 0
        %v230 = vsel %vm210, %v151, 0
        %v233 = vsel %vm210, %v152, 0
        %v236 = vsel %vm210, %v153, 0
        %v239 = vsel %vm210, %v154, 0
        %v242 = vsel %vm210, %v155, 0
        %v245 = vsel %vm210, %v156, 0
        %v248 = vsel %vm210, %v157, 0
        %v251 = vsel %vm210, %v158, 0
        %v254 = vsel %vm210, %v159, 0
        %v257 = vsel %vm210, %v160, 0
        %v260 = vsel %vm210, %v161, 0
        %v263 = vsel %vm210, %v162, 0
        %v266 = vsel %vm210, %v163, 0
        %v269 = vsel %vm210, %v164, 0
        %v272 = vsel %vm210, %v165, 0
        %v275 = vsel %vm210, %v166, 0
        %v278 = vsel %vm210, %v167, 0
        %v281 = vsel %vm210, %v168, 0
        %v284 = vsel %vm210, %v169, 0
        %v287 = vsel %vm210, %v170, 0
        %v290 = vsel %vm210, %v171, 0
        %v293 = vsel %vm210, %v172, 0
        %v296 = vsel %vm210, %v173, 0
        %v299 = vsel %vm210, %v174, 0
        %v302 = vsel %vm210, %v175, 0
        %v305 = vsel %vm210, %v176, 0
        %v308 = vsel %vm210, %v177, 0
        %v311 = vsel %vm210, %v178, 0
        %v314 = vsel %vm210, %v179, 0
        %v317 = vsel %vm210, %v180, 0
        %v320 = vsel %vm210, %v181, 0
        %v323 = vsel %vm210, %v182, 0
        %v326 = vsel %vm210, %v183, 0
        %v329 = vsel %vm210, %v184, 0
        %v332 = vsel %vm210, %v185, 0
        %v335 = vsel %vm210, %v186, 0
        %v338 = vsel %vm210, %v187, 0
        %v341 = vsel %vm210, %v188, 0
        %v344 = vsel %vm210, %v189, 0
        %v347 = vsel %vm210, %v190, 0
        %v350 = vsel %vm210, %v191, 0
        %v353 = vsel %vm210, %v192, 0
        %v356 = vsel %vm210, %v193, 0
        %v359 = vsel %vm210, %v194, 0
        %v362 = vsel %vm210, %v195, 0
        %v365 = vsel %vm210, %v196, 0
        %v368 = vsel %vm210, %v197, 0
        %v371 = vsel %vm210, %v198, 0
        %v374 = vsel %vm210, %v199, 0
        %v377 = vsel %vm210, %v200, 0
        %v380 = vsel %vm210, %v201, 0
        %v383 = vsel %vm210, %v202, 0
        %v386 = vsel %vm210, %v203, 0
        %v389 = vsel %vm210, %v204, 0
        %v392 = vsel %vm210, %v205, 0
        %v395 = vsel %vm210, %v206, 0
        %v398 = vsel %vm210, %v207, 0
        %v401 = vsel %vm210, %v208, 0
        %v404 = vsel %vm210, %v209, 0
        %406 = vmatprep.subr.mxu0 0.0
        %407 = vmatpush1.xpose.msra.mxu0 %v215
        %408 = vmatprep.subr.mxu0 0.0
        %409 = vmatpush1.xpose.msra.mxu0 %v218
        %410 = vmatprep.subr.mxu0 0.0
        %411 = vmatpush1.xpose.msra.mxu0 %v221
        %412 = vmatprep.subr.mxu0 0.0
        %413 = vmatpush1.xpose.msra.mxu0 %v224
        %414 = vmatprep.subr.mxu0 0.0
        %415 = vmatpush1.xpose.msra.mxu0 %v227
        %416 = vmatprep.subr.mxu0 0.0
        %417 = vmatpush1.xpose.msra.mxu0 %v230
        %418 = vmatprep.subr.mxu0 0.0
        %419 = vmatpush1.xpose.msra.mxu0 %v233
        %420 = vmatprep.subr.mxu0 0.0
        %421 = vmatpush1.xpose.msra.mxu0 %v236
        %422 = vmatprep.subr.mxu0 0.0
        %423 = vmatpush1.xpose.msra.mxu0 %v239
        %424 = vmatprep.subr.mxu0 0.0
        %425 = vmatpush1.xpose.msra.mxu0 %v242
        %426 = vmatprep.subr.mxu0 0.0
        %427 = vmatpush1.xpose.msra.mxu0 %v245
        %428 = vmatprep.subr.mxu0 0.0
        %429 = vmatpush1.xpose.msra.mxu0 %v248
        %430 = vmatprep.subr.mxu0 0.0
        %431 = vmatpush1.xpose.msra.mxu0 %v251
        %432 = vmatprep.subr.mxu0 0.0
        %433 = vmatpush1.xpose.msra.mxu0 %v254
        %434 = vmatprep.subr.mxu0 0.0
        %435 = vmatpush1.xpose.msra.mxu0 %v257
        %436 = vmatprep.subr.mxu0 0.0
        %437 = vmatpush1.xpose.msra.mxu0 %v260
        %438 = vmatprep.subr.mxu0 0.0
        %439 = vmatpush1.xpose.msra.mxu0 %v263
        %440 = vmatprep.subr.mxu0 0.0
        %441 = vmatpush1.xpose.msra.mxu0 %v266
        %442 = vmatprep.subr.mxu0 0.0
        %443 = vmatpush1.xpose.msra.mxu0 %v269
        %444 = vmatprep.subr.mxu0 0.0
        %445 = vmatpush1.xpose.msra.mxu0 %v272
        %446 = vmatprep.subr.mxu0 0.0
        %447 = vmatpush1.xpose.msra.mxu0 %v275
        %448 = vmatprep.subr.mxu0 0.0
        %449 = vmatpush1.xpose.msra.mxu0 %v278
        %450 = vmatprep.subr.mxu0 0.0
        %451 = vmatpush1.xpose.msra.mxu0 %v281
        %452 = vmatprep.subr.mxu0 0.0
        %453 = vmatpush1.xpose.msra.mxu0 %v284
        %454 = vmatprep.subr.mxu0 0.0
        %455 = vmatpush1.xpose.msra.mxu0 %v287
        %456 = vmatprep.subr.mxu0 0.0
        %457 = vmatpush1.xpose.msra.mxu0 %v290
        %458 = vmatprep.subr.mxu0 0.0
        %459 = vmatpush1.xpose.msra.mxu0 %v293
        %460 = vmatprep.subr.mxu0 0.0
        %461 = vmatpush1.xpose.msra.mxu0 %v296
        %462 = vmatprep.subr.mxu0 0.0
        %463 = vmatpush1.xpose.msra.mxu0 %v299
        %464 = vmatprep.subr.mxu0 0.0
        %465 = vmatpush1.xpose.msra.mxu0 %v302
        %466 = vmatprep.subr.mxu0 0.0
        %467 = vmatpush1.xpose.msra.mxu0 %v305
        %468 = vmatprep.subr.mxu0 0.0
        %469 = vmatpush1.xpose.msra.mxu0 %v308
        %470 = vmatprep.mubr.f32.mxu0 0.0
        %471 = vmatmul.mubr.f32.gmra.mrb[0].mxu0 %v212
        %v472 = vpop.f32.mrb[0].mxu0
        %v473 = vadd.f32 0.0, %v472
        %v474 = vpop.f32.mrb[0].mxu0
        %v475 = vadd.f32 0.0, %v474
        %476 = vdwg.mxu0
        %477 = vmatprep.subr.mxu0 0.0
        %478 = vmatpush1.xpose.msra.mxu0 %v311
        %479 = vmatprep.subr.mxu0 0.0
        %480 = vmatpush1.xpose.msra.mxu0 %v314
        %481 = vmatprep.subr.mxu0 0.0
        %482 = vmatpush1.xpose.msra.mxu0 %v317
        %483 = vmatprep.subr.mxu0 0.0
        %484 = vmatpush1.xpose.msra.mxu0 %v320
        %485 = vmatprep.subr.mxu0 0.0
        %486 = vmatpush1.xpose.msra.mxu0 %v323
        %487 = vmatprep.subr.mxu0 0.0
        %488 = vmatpush1.xpose.msra.mxu0 %v326
        %489 = vmatprep.subr.mxu0 0.0
        %490 = vmatpush1.xpose.msra.mxu0 %v329
        %491 = vmatprep.subr.mxu0 0.0
        %492 = vmatpush1.xpose.msra.mxu0 %v332
        %493 = vmatprep.subr.mxu0 0.0
        %494 = vmatpush1.xpose.msra.mxu0 %v335
        %495 = vmatprep.subr.mxu0 0.0
        %496 = vmatpush1.xpose.msra.mxu0 %v338
        %497 = vmatprep.subr.mxu0 0.0
        %498 = vmatpush1.xpose.msra.mxu0 %v341
        %499 = vmatprep.subr.mxu0 0.0
        %500 = vmatpush1.xpose.msra.mxu0 %v344
        %501 = vmatprep.subr.mxu0 0.0
        %502 = vmatpush1.xpose.msra.mxu0 %v347
        %503 = vmatprep.subr.mxu0 0.0
        %504 = vmatpush1.xpose.msra.mxu0 %v350
        %505 = vmatprep.subr.mxu0 0.0
        %506 = vmatpush1.xpose.msra.mxu0 %v353
        %507 = vmatprep.subr.mxu0 0.0
        %508 = vmatpush1.xpose.msra.mxu0 %v356
        %509 = vmatprep.subr.mxu0 0.0
        %510 = vmatpush1.xpose.msra.mxu0 %v359
        %511 = vmatprep.subr.mxu0 0.0
        %512 = vmatpush1.xpose.msra.mxu0 %v362
        %513 = vmatprep.subr.mxu0 0.0
        %514 = vmatpush1.xpose.msra.mxu0 %v365
        %515 = vmatprep.subr.mxu0 0.0
        %516 = vmatpush1.xpose.msra.mxu0 %v368
        %517 = vmatprep.subr.mxu0 0.0
        %518 = vmatpush1.xpose.msra.mxu0 %v371
        %519 = vmatprep.subr.mxu0 0.0
        %520 = vmatpush1.xpose.msra.mxu0 %v374
        %521 = vmatprep.subr.mxu0 0.0
        %522 = vmatpush1.xpose.msra.mxu0 %v377
        %523 = vmatprep.subr.mxu0 0.0
        %524 = vmatpush1.xpose.msra.mxu0 %v380
        %525 = vmatprep.subr.mxu0 0.0
        %526 = vmatpush1.xpose.msra.mxu0 %v383
        %527 = vmatprep.subr.mxu0 0.0
        %528 = vmatpush1.xpose.msra.mxu0 %v386
        %529 = vmatprep.subr.mxu0 0.0
        %530 = vmatpush1.xpose.msra.mxu0 %v389
        %531 = vmatprep.subr.mxu0 0.0
        %532 = vmatpush1.xpose.msra.mxu0 %v392
        %533 = vmatprep.subr.mxu0 0.0
        %534 = vmatpush1.xpose.msra.mxu0 %v395
        %535 = vmatprep.subr.mxu0 0.0
        %536 = vmatpush1.xpose.msra.mxu0 %v398
        %537 = vmatprep.subr.mxu0 0.0
        %538 = vmatpush1.xpose.msra.mxu0 %v401
        %539 = vmatprep.subr.mxu0 0.0
        %540 = vmatpush1.xpose.msra.mxu0 %v404
        %541 = vmatprep.mubr.f32.mxu0 0.0
        %542 = vmatmul.mubr.f32.gmra.mrb[0].mxu0 %v212
        %v543 = vpop.f32.mrb[0].mxu0
        %v544 = vadd.f32 0.0, %v543
        %v545 = vpop.f32.mrb[0].mxu0
        %v546 = vadd.f32 0.0, %v545
        %547 = vdwg.mxu0
        %v548 = vxor.u32 %v473, 2147483648
        %v549 = vxor.u32 %v475, 2147483648
        %v550 = vxor.u32 %v544, 2147483648
        %v551 = vxor.u32 %v546, 2147483648
        %v552 = vmul.f32 %v548, 1.442695
        %v553 = vpow.pop %v552
        %v554 = vmul.f32 %v549, 1.442695
        %v555 = vpow.pop %v554
        %v556 = vmul.f32 %v550, 1.442695
        %v557 = vpow.pop %v556
        %v558 = vmul.f32 %v551, 1.442695
        %v559 = vpow.pop %v558
        %v560 = vadd.f32 %v553, 1.0
        %v561 = vadd.f32 %v555, 1.0
        %v562 = vadd.f32 %v557, 1.0
        %v563 = vadd.f32 %v559, 1.0
        %v564 = vrcp.pop %v560
        %v565 = vmul.f32 1.0, %v564
        %v566 = vrcp.pop %v561
        %v567 = vmul.f32 1.0, %v566
        %v568 = vrcp.pop %v562
        %v569 = vmul.f32 1.0, %v568
        %v570 = vrcp.pop %v563
        %v571 = vmul.f32 1.0, %v570
        %572 = vst [vmem:[%s137] sm:$0xff] %v565
        %573 = vst [vmem:[%s137 + $0x8] sm:$0xff] %v567
        %574 = vst [vmem:[%s137 + $0x10] sm:$0xff] %v569
        %575 = vst [vmem:[%s137 + $0x18] sm:$0xff] %v571
        %s576 = sand.u32 %s71, 1
        %s577 = scalar_lea.sflag [#allocation3], %s576
        %s578 = sand.u32 %s71, 1
        %s579 = smul.addr %s578, 32
        %s580 = scalar_lea.vmem [#allocation2], %s579
        // Predicated region
        $region29: #{kge_forward.1} parent=27 // pred_check
          %p581 = pneg %p81
        $region30: #{kge_forward.1} parent=27 // pred_check_branch
          %583 = sbr.rel (%p581) target = $region32
        $region31: #{kge_forward.1} parent=27 // pred_region
          %s584 = smul.u32 4, %s16
          %s586 = ssub.s32 512, 512
          %587 = vsyncadd %s577, %s586
          %s588 = smul.addr %s584, 128
          %s589 = scalar_lea.hbm %s2, %s588
          %s591 = sshll.u32 %s580, 4
          %s592 = int_to_ptr.vmem [resolvable:$true] %s591
          %594 = dma.vmem_to_hbm [thread:$0]  %s592, 512, %s589, %s577
        $region32: #{kge_forward.1} parent=27 // pred_fallthru
          _
      $region28: #{kge_forward.1} parent=5 // pred_fallthru
        _
      %p595 = scmp.le.s32.totalorder 2, %s11
      // Predicated region
      $region33: #{kge_forward.1} parent=5 // pred_check
        %p596 = pneg %p595
      $region34: #{kge_forward.1} parent=5 // pred_check_branch
        %598 = sbr.rel (%p596) target = $region36
      $region35: #{kge_forward.1} parent=5 // pred_region
        %s599 = ssub.s32 %s11, 2
        // Predicated region
        $region37: #{kge_forward.1} parent=35 // pred_check
          %p600 = pneg %p87
        $region38: #{kge_forward.1} parent=35 // pred_check_branch
          %602 = sbr.rel (%p600) target = $region40
        $region39: #{kge_forward.1} parent=35 // pred_region
          %s603 = sand.u32 %s72, 1
          %s604 = scalar_lea.sflag [#allocation3], %s603
          %s605 = sand.u32 %s72, 1
          %s606 = smul.addr %s605, 32
          %s607 = scalar_lea.vmem [#allocation2], %s606
          %608 = dma.done %s604, 512
        $region40: #{kge_forward.1} parent=35 // pred_fallthru
          _
      $region36: #{kge_forward.1} parent=5 // pred_fallthru
        _
    $region6: #{kge_forward.1} parent=1 // loop_footer
      %s15 = sadd.s32 1, %s11
    $region7: #{kge_forward.1} parent=1 // loop_footer_branch
      %10 = sbr.rel target = $region3
    $region8: #{kge_forward.1} parent=1 // loop_exit
      _
    %609 = vsyncpa [#allocation3], 1
    %s610 = scalar_lea.sflag [#allocation3], 1
    %611 = vsyncpa %s610, 1

</llo_original>
